<compile_context>
chip_gen: v7x
topology: tpu7x:2x2x1
jax: 0.10.0
libtpu: 0.0.40
codegen_flags: <defaults>
</compile_context>

<pallas_src>
import functools

import jax
import jax.numpy as jnp
from jax import lax
from jax.experimental import pallas as pl
from jax.experimental.pallas import tpu as pltpu


# ----------------------------------------------------------------------------
# Kernel
# ----------------------------------------------------------------------------
def _make_kernel(b_tile, hp_pad, h_out, k_pad, lanes_out, kh_taps, stride):
    row_span = (h_out - 1) * stride + 1

    def kernel(x_ref, t_ref, bias_ref, o_ref):
        # x_ref:    (b_tile*hp_pad, k_pad)     bf16, lane-dense (K padded to 128)
        # t_ref:    (KH, k_pad, lanes_out)     bf16, BN scale folded in
        # bias_ref: (1, lanes_out)             f32 BN bias tiled over W_out
        # o_ref:    (b_tile, h_out, lanes_out)
        bias = bias_ref[...]
        xb = x_ref[...]

        if stride == 1:
            # One big GEMM per vertical tap: RHS stays resident in the MXU
            # across every image in the block; M = b_tile * hp_pad.
            prods = [
                jnp.dot(xb, t_ref[kh], preferred_element_type=jnp.float32)
                for kh in range(kh_taps)
            ]
            for b in range(b_tile):
                base = b * hp_pad
                # acc initialized from the kh=0 product (no zero-fill).
                acc = prods[0][base:base + h_out]
                for kh in range(1, kh_taps):
                    acc = acc + prods[kh][base + kh:base + kh + h_out]
                o_ref[b] = jnp.maximum(acc + bias, 0.0).astype(o_ref.dtype)
        else:
            # Generic stride: per-image strided row slabs, kh OUTERMOST so the
            # tap's RHS stays resident across all b_tile LHS pushes.
            accs = [None] * b_tile
            for kh in range(kh_taps):
                t_kh = t_ref[kh]
                for b in range(b_tile):
                    base = b * hp_pad
                    slab = lax.slice(xb, (base + kh, 0),
                                     (base + kh + row_span, k_pad),
                                     (stride, 1))
                    d = jnp.dot(slab, t_kh, preferred_element_type=jnp.float32)
                    accs[b] = d if accs[b] is None else accs[b] + d
            for b in range(b_tile):
                o_ref[b] = jnp.maximum(accs[b] + bias, 0.0).astype(o_ref.dtype)

    return kernel


# ----------------------------------------------------------------------------
# Weight preprocessing (once per parameter set, NOT per forward call)
# ----------------------------------------------------------------------------
def prepare_conv_bn(w_oihw, gamma, beta, running_mean, running_var, *,
                    stride, padding, in_hw, eps=1e-5):
    """Fold eval-mode BatchNorm into the conv weight and lower the conv to
    KH banded (Toeplitz) GEMM matrices over the lane-flattened W*Cin axis."""
    H, W = in_hw
    C_out, C_in, KH, KW = w_oihw.shape
    H_out = (H + 2 * padding - KH) // stride + 1
    W_out = (W + 2 * padding - KW) // stride + 1
    Hp, Wp = H + 2 * padding, W + 2 * padding

    scale = gamma / jnp.sqrt(running_var + eps)              # (Cout,)
    bias = beta - running_mean * scale                       # (Cout,)
    w = jnp.transpose(w_oihw, (2, 3, 1, 0)).astype(jnp.float32) * scale
    # w: (KH, KW, Cin, Cout), BN scale folded in.

    # T[kh][(wp*Cin+ci), (w*Cout+co)] = w[kh, wp - w*stride, ci, co] (0 if oob)
    wp_idx = jnp.arange(Wp)
    w_idx = jnp.arange(W_out)
    kw_rel = wp_idx[:, None] - w_idx[None, :] * stride        # (Wp, W_out)
    valid = (kw_rel >= 0) & (kw_rel < KW)
    kw_clamped = jnp.clip(kw_rel, 0, KW - 1)
    T = w[:, kw_clamped]                                      # (KH, Wp, Wout, Cin, Cout)
    T = jnp.where(valid[None, :, :, None, None], T, 0.0)
    T = jnp.transpose(T, (0, 1, 3, 2, 4)).reshape(KH, Wp * C_in, W_out * C_out)

    k_raw = Wp * C_in
    lanes_out = W_out * C_out
    # Zero-pad the contraction dim to a multiple of 128 (lane-dense LHS rows,
    # natively-tiled MXU contraction); zero rows contribute nothing.
    k_pad = max(128, ((k_raw + 127) // 128) * 128)
    T = jnp.pad(T, ((0, 0), (0, k_pad - k_raw), (0, 0))).astype(jnp.bfloat16)

    bias_tiled = jnp.tile(bias.astype(jnp.float32), W_out).reshape(1, lanes_out)

    geom = dict(stride=stride, padding=padding, KH=KH, C_in=C_in, C_out=C_out,
                H=H, W=W, H_out=H_out, W_out=W_out, Hp=Hp, Wp=Wp,
                k_raw=k_raw, k_pad=k_pad, lanes_out=lanes_out)
    return T, bias_tiled, geom


# ----------------------------------------------------------------------------
# Grid-step sizing (gate the >=2-step split on TensorCore count)
# ----------------------------------------------------------------------------
_MAX_B_TILE = 8  # bound per-step product/VMEM footprint


def _num_tensorcores_per_chip():
    """Best-effort TensorCores-per-device (2 on v7x-style parts, else 1)."""
    try:
        info = pltpu.get_tpu_info()
        for name in ("num_cores", "core_count", "cores_per_chip",
                     "num_tensorcores"):
            v = getattr(info, name, None)
            if isinstance(v, int) and v > 0:
                return v
    except Exception:
        pass
    try:
        dev = jax.devices()[0]
        for name in ("num_cores", "core_count"):
            v = getattr(dev, name, None)
            if isinstance(v, int) and v > 0:
                return v
    except Exception:
        pass
    return 1


def _pick_b_tile(n_batch):
    n_cores = _num_tensorcores_per_chip()
    divisors = [d for d in range(1, min(n_batch, _MAX_B_TILE) + 1)
                if n_batch % d == 0]
    if n_cores > 1:
        # Keep a balanced "parallel" grid across TensorCores.
        balanced = [d for d in divisors if (n_batch // d) % n_cores == 0]
        if balanced:
            return max(balanced)
    # Single TensorCore (v5e/v6e): one big step -> no per-step overhead and
    # the largest possible matmul M.
    return max(divisors)


# ----------------------------------------------------------------------------
# Forward apply
# ----------------------------------------------------------------------------
def conv_bn_act_apply(x_nchw, T, bias_tiled, geom):
    g = geom
    N = x_nchw.shape[0]
    Hp, Wp = g['Hp'], g['Wp']
    hp_pad = ((Hp + 7) // 8) * 8          # sublane-pad rows per image
    k_pad, lanes_out, H_out = g['k_pad'], g['lanes_out'], g['H_out']

    # TODO(synk): in a full NHWC model these NCHW<->NHWC relayouts and the
    # final transpose-back would be elided; they only exist to match the
    # PyTorch module's NCHW interface.
    x = jnp.transpose(x_nchw, (0, 2, 3, 1))
    x = jnp.pad(x, ((0, 0), (g['padding'],) * 2, (g['padding'],) * 2, (0, 0)))
    x = x.reshape(N, Hp, Wp * g['C_in'])
    # Lane-pad K to 128 and sublane-pad Hp to a multiple of 8 so the flattened
    # (N*hp_pad, k_pad) view tiles/loads without masking.
    x = jnp.pad(x, ((0, 0), (0, hp_pad - Hp), (0, k_pad - g['k_raw'])))
    x = x.reshape(N * hp_pad, k_pad).astype(jnp.bfloat16)

    b_tile = _pick_b_tile(N)
    kernel = _make_kernel(b_tile, hp_pad, H_out, k_pad, lanes_out,
                          g['KH'], g['stride'])

    out = pl.pallas_call(
        kernel,
        out_shape=jax.ShapeDtypeStruct((N, H_out, lanes_out), x_nchw.dtype),
        grid_spec=pltpu.PrefetchScalarGridSpec(
            num_scalar_prefetch=0,
            grid=(N // b_tile,),
            in_specs=[
                pl.BlockSpec((b_tile * hp_pad, k_pad), lambda n: (n, 0)),
                pl.BlockSpec((g['KH'], k_pad, lanes_out), lambda n: (0, 0, 0)),
                pl.BlockSpec((1, lanes_out), lambda n: (0, 0)),
            ],
            out_specs=pl.BlockSpec((b_tile, H_out, lanes_out),
                                   lambda n: (n, 0, 0)),
        ),
        compiler_params=pltpu.CompilerParams(
            dimension_semantics=("parallel",)),
    )(x, T, bias_tiled)

    # (N, Hout, Wout*Cout) -> (N, Cout, Hout, Wout) to match PyTorch NCHW.
    out = out.reshape(N, H_out, g['W_out'], g['C_out'])
    return jnp.transpose(out, (0, 3, 1, 2))


def conv_bn_act(x_nchw, w_oihw, gamma, beta, running_mean, running_var, *,
                stride, padding, eps=1e-5):
    """Convenience end-to-end wrapper (weight prep + apply)."""
    T, bias_tiled, geom = prepare_conv_bn(
        w_oihw, gamma, beta, running_mean, running_var,
        stride=stride, padding=padding, in_hw=x_nchw.shape[2:], eps=eps)
    return conv_bn_act_apply(x_nchw, T, bias_tiled, geom)


# ----------------------------------------------------------------------------
# Reference
# ----------------------------------------------------------------------------
def _reference(x_nchw, w_oihw, gamma, beta, mean, var, *, stride, padding,
               eps=1e-5, quantize_bf16=False):
    scale = gamma / jnp.sqrt(var + eps)
    bias = beta - mean * scale
    w = w_oihw.astype(jnp.float32) * scale[:, None, None, None]
    x = x_nchw.astype(jnp.float32)
    if quantize_bf16:
        # Match the kernel's bf16 rounding of inputs / folded weights
        # (accumulation stays f32 in both).
        w = w.astype(jnp.bfloat16).astype(jnp.float32)
        x = x.astype(jnp.bfloat16).astype(jnp.float32)
    y = lax.conv_general_dilated(
        x, w, window_strides=(stride, stride),
        padding=((padding, padding), (padding, padding)),
        dimension_numbers=("NCHW", "OIHW", "NCHW"),
        precision=lax.Precision.HIGHEST)
    y = y + bias[None, :, None, None]
    return jnp.maximum(y, 0.0)


if __name__ == "__main__":
    # Shapes consistent with ConvBNAct(4, 8, 3, 1, 1).
    N, C_in, H, W = 2, 4, 16, 16
    C_out, K, stride, padding = 8, 3, 1, 1

    key = jax.random.PRNGKey(0)
    kx, kw, kg, kb, km, kv = jax.random.split(key, 6)

    x = jax.random.normal(kx, (N, C_in, H, W), jnp.float32)
    w = jax.random.normal(kw, (C_out, C_in, K, K), jnp.float32) * 0.1
    gamma = 1.0 + 0.1 * jax.random.normal(kg, (C_out,), jnp.float32)
    beta = 0.1 * jax.random.normal(kb, (C_out,), jnp.float32)
    running_mean = 0.1 * jax.random.normal(km, (C_out,), jnp.float32)
    running_var = jnp.abs(1.0 + 0.1 * jax.random.normal(kv, (C_out,), jnp.float32))

    # Weight preprocessing (BN fold + Toeplitz lowering): once per param set.
    T, bias_tiled, geom = prepare_conv_bn(
        w, gamma, beta, running_mean, running_var,
        stride=stride, padding=padding, in_hw=(H, W))

    fwd = jax.jit(functools.partial(conv_bn_act_apply, geom=geom))
    out = jax.block_until_ready(fwd(x, T, bias_tiled))
    assert out.shape == (N, C_out, H, W), out.shape

    # Tight check vs. a reference with the same bf16 rounding of the folded
    # weights / inputs (kernel differs only by f32 accumulation order).
    ref_q = _reference(x, w, gamma, beta, running_mean, running_var,
                       stride=stride, padding=padding, quantize_bf16=True)
    assert jnp.allclose(out, ref_q, atol=1e-3, rtol=1e-3), \
        float(jnp.max(jnp.abs(out - ref_q)))

    # Loose sanity check vs. the exact f32 reference (bf16 rounding error).
    ref = _reference(x, w, gamma, beta, running_mean, running_var,
                     stride=stride, padding=padding, quantize_bf16=False)
    assert jnp.allclose(out, ref, atol=5e-2, rtol=5e-2), \
        float(jnp.max(jnp.abs(out - ref)))

    print("KERNEL_OK")
</pallas_src>

<mosaic_0001>
module attributes {stable_mosaic.version = 11 : i64} {
  func.func @kernel(%arg0: i32, %arg1: memref<48x128xbf16, #tpu.memory_space<vmem>>, %arg2: memref<3x128x128xbf16, #tpu.memory_space<vmem>>, %arg3: memref<1x128xf32, #tpu.memory_space<vmem>>, %arg4: memref<2x16x128xf32, #tpu.memory_space<vmem>>) attributes {dimension_semantics = [#tpu.dimension_semantics<parallel>], iteration_bounds = array<i64: 1>, scalar_prefetch = 0 : i64, scratch_operands = 0 : i64, tpu.core_type = #tpu.core_type<tc>, window_params = [{transform_indices = @transform_0, window_bounds = array<i64: 48, 128>}, {pipeline_mode = #tpu.pipeline_mode<synchronous>, transform_indices = @transform_1, window_bounds = array<i64: 3, 128, 128>}, {pipeline_mode = #tpu.pipeline_mode<synchronous>, transform_indices = @transform_2, window_bounds = array<i64: 1, 128>}, {transform_indices = @transform_3, window_bounds = array<i64: 2, 16, 128>}]} {
    %c0 = arith.constant 0 : index
    %c0_0 = arith.constant 0 : index
    %0 = vector.load %arg3[%c0, %c0_0] : memref<1x128xf32, #tpu.memory_space<vmem>>, vector<1x128xf32>
    %c0_1 = arith.constant 0 : index
    %c0_2 = arith.constant 0 : index
    %1 = vector.load %arg1[%c0_1, %c0_2] : memref<48x128xbf16, #tpu.memory_space<vmem>>, vector<48x128xbf16>
    %c0_3 = arith.constant 0 : index
    %c0_4 = arith.constant 0 : index
    %c0_5 = arith.constant 0 : index
    %2 = vector.load %arg2[%c0_3, %c0_4, %c0_5] : memref<3x128x128xbf16, #tpu.memory_space<vmem>>, vector<1x128x128xbf16>
    %3 = vector.shape_cast %2 : vector<1x128x128xbf16> to vector<128x128xbf16>
    %cst = arith.constant dense<0.000000e+00> : vector<48x128xf32>
    %4 = tpu.matmul %1, %3, %cst {dimension_numbers = #tpu.dot_dimension_numbers<[1], [0], [0], [1], [0, 0, 1, 1], [], []>} : vector<48x128xbf16>, vector<128x128xbf16>, vector<48x128xf32> -> vector<48x128xf32>
    %c1 = arith.constant 1 : index
    %c0_6 = arith.constant 0 : index
    %c0_7 = arith.constant 0 : index
    %5 = vector.load %arg2[%c1, %c0_6, %c0_7] : memref<3x128x128xbf16, #tpu.memory_space<vmem>>, vector<1x128x128xbf16>
    %6 = vector.shape_cast %5 : vector<1x128x128xbf16> to vector<128x128xbf16>
    %cst_8 = arith.constant dense<0.000000e+00> : vector<48x128xf32>
    %7 = tpu.matmul %1, %6, %cst_8 {dimension_numbers = #tpu.dot_dimension_numbers<[1], [0], [0], [1], [0, 0, 1, 1], [], []>} : vector<48x128xbf16>, vector<128x128xbf16>, vector<48x128xf32> -> vector<48x128xf32>
    %c2 = arith.constant 2 : index
    %c0_9 = arith.constant 0 : index
    %c0_10 = arith.constant 0 : index
    %8 = vector.load %arg2[%c2, %c0_9, %c0_10] : memref<3x128x128xbf16, #tpu.memory_space<vmem>>, vector<1x128x128xbf16>
    %9 = vector.shape_cast %8 : vector<1x128x128xbf16> to vector<128x128xbf16>
    %cst_11 = arith.constant dense<0.000000e+00> : vector<48x128xf32>
    %10 = tpu.matmul %1, %9, %cst_11 {dimension_numbers = #tpu.dot_dimension_numbers<[1], [0], [0], [1], [0, 0, 1, 1], [], []>} : vector<48x128xbf16>, vector<128x128xbf16>, vector<48x128xf32> -> vector<48x128xf32>
    %11 = vector.extract_strided_slice %4 {offsets = [0, 0], sizes = [16, 128], strides = [1, 1]} : vector<48x128xf32> to vector<16x128xf32>
    %12 = vector.extract_strided_slice %7 {offsets = [1, 0], sizes = [16, 128], strides = [1, 1]} : vector<48x128xf32> to vector<16x128xf32>
    %13 = arith.addf %11, %12 : vector<16x128xf32>
    %14 = vector.extract_strided_slice %10 {offsets = [2, 0], sizes = [16, 128], strides = [1, 1]} : vector<48x128xf32> to vector<16x128xf32>
    %15 = arith.addf %13, %14 : vector<16x128xf32>
    %16 = vector.broadcast %0 : vector<1x128xf32> to vector<16x128xf32>
    %17 = arith.addf %15, %16 : vector<16x128xf32>
    %cst_12 = arith.constant 0.000000e+00 : f32
    %18 = vector.broadcast %cst_12 : f32 to vector<16x128xf32>
    %19 = arith.maximumf %17, %18 : vector<16x128xf32>
    %c0_13 = arith.constant 0 : index
    %c0_14 = arith.constant 0 : index
    %c0_15 = arith.constant 0 : index
    %20 = vector.load %arg4[%c0_13, %c0_14, %c0_15] : memref<2x16x128xf32, #tpu.memory_space<vmem>>, vector<1x16x128xf32>
    %21 = vector.shape_cast %20 : vector<1x16x128xf32> to vector<16x128xf32>
    %22 = vector.shape_cast %19 : vector<16x128xf32> to vector<1x16x128xf32>
    tpu.vector_store %arg4[%c0_13, %c0_14, %c0_15], %22 {strides = array<i32>} : memref<2x16x128xf32, #tpu.memory_space<vmem>>, vector<1x16x128xf32>,
    %23 = vector.extract_strided_slice %4 {offsets = [24, 0], sizes = [16, 128], strides = [1, 1]} : vector<48x128xf32> to vector<16x128xf32>
    %24 = vector.extract_strided_slice %7 {offsets = [25, 0], sizes = [16, 128], strides = [1, 1]} : vector<48x128xf32> to vector<16x128xf32>
    %25 = arith.addf %23, %24 : vector<16x128xf32>
    %26 = vector.extract_strided_slice %10 {offsets = [26, 0], sizes = [16, 128], strides = [1, 1]} : vector<48x128xf32> to vector<16x128xf32>
    %27 = arith.addf %25, %26 : vector<16x128xf32>
    %28 = vector.broadcast %0 : vector<1x128xf32> to vector<16x128xf32>
    %29 = arith.addf %27, %28 : vector<16x128xf32>
    %cst_16 = arith.constant 0.000000e+00 : f32
    %30 = vector.broadcast %cst_16 : f32 to vector<16x128xf32>
    %31 = arith.maximumf %29, %30 : vector<16x128xf32>
    %c1_17 = arith.constant 1 : index
    %c0_18 = arith.constant 0 : index
    %c0_19 = arith.constant 0 : index
    %32 = vector.load %arg4[%c1_17, %c0_18, %c0_19] : memref<2x16x128xf32, #tpu.memory_space<vmem>>, vector<1x16x128xf32>
    %33 = vector.shape_cast %32 : vector<1x16x128xf32> to vector<16x128xf32>
    %34 = vector.shape_cast %31 : vector<16x128xf32> to vector<1x16x128xf32>
    tpu.vector_store %arg4[%c1_17, %c0_18, %c0_19], %34 {strides = array<i32>} : memref<2x16x128xf32, #tpu.memory_space<vmem>>, vector<1x16x128xf32>,
    return
  }
  func.func @transform_0(%arg0: i32) -> (i32, i32) {
    %c0_i32 = arith.constant 0 : i32
    %c0_i32_0 = arith.constant 0 : i32
    return %arg0, %c0_i32 : i32, i32
  }
  func.func @transform_1(%arg0: i32) -> (i32, i32, i32) {
    %c0_i32 = arith.constant 0 : i32
    %c0_i32_0 = arith.constant 0 : i32
    %c0_i32_1 = arith.constant 0 : i32
    %c0_i32_2 = arith.constant 0 : i32
    return %c0_i32, %c0_i32_0, %c0_i32_1 : i32, i32, i32
  }
  func.func @transform_2(%arg0: i32) -> (i32, i32) {
    %c0_i32 = arith.constant 0 : i32
    %c0_i32_0 = arith.constant 0 : i32
    %c0_i32_1 = arith.constant 0 : i32
    return %c0_i32, %c0_i32_0 : i32, i32
  }
  func.func @transform_3(%arg0: i32) -> (i32, i32, i32) {
    %c0_i32 = arith.constant 0 : i32
    %c0_i32_0 = arith.constant 0 : i32
    %c0_i32_1 = arith.constant 0 : i32
    return %arg0, %c0_i32, %c0_i32_0 : i32, i32, i32
  }
}

</mosaic_0001>

<llo_original>
// kernel: conv_bn_act_apply.1
$region0: #{conv_bn_act_apply.1}
  #allocation0 [shape = 'u32[]', space=smem, size = 0x4, offset = 0x4, fixed_abs, tag = 'smem constant byte address 0x4 - core index']
  #allocation1 [shape = 'u32[144,128]{1,0:T(1,128)}', space=vmem, size = 0x12000, scoped, tag = 'internal scratch']
  %s0 = inlined_call_operand.vmem [shape: bf16[48,128], index: 0, kind: input, shape index: {}]
  %s1 = inlined_call_operand.vmem [shape: bf16[3,128,128], index: 1, kind: input, shape index: {}]
  %s2 = inlined_call_operand.vmem [shape: f32[1,128], index: 2, kind: input, shape index: {}]
  %s3 = inlined_call_operand.vmem [shape: f32[2,16,128], index: 3, kind: output, shape index: {}]
  %s4 = sld [smem:[#allocation0]]
  $region22: #{conv_bn_act_apply.1} parent=0
    _
  %s6 = ssub.s32 1, %s4
  %s7 = scalar_select 0, %s6, %s4
  // Predicated region
  $region2: #{conv_bn_act_apply.1} parent=0 // pred_check
    _
  $region3: #{conv_bn_act_apply.1} parent=0 // pred_check_branch
    %9 = sbr.rel (0) target = $region5
  $region4: #{conv_bn_act_apply.1} parent=0 // pred_region
    _
  $region5: #{conv_bn_act_apply.1} parent=0 // pred_fallthru
    _
  // Predicated region
  $region6: #{conv_bn_act_apply.1} parent=0 // pred_check
    _
  $region7: #{conv_bn_act_apply.1} parent=0 // pred_check_branch
    %11 = sbr.rel (0) target = $region9
  $region8: #{conv_bn_act_apply.1} parent=0 // pred_region
    _
  $region9: #{conv_bn_act_apply.1} parent=0 // pred_fallthru
    _
  // Predicated region
  $region10: #{conv_bn_act_apply.1} parent=0 // pred_check
    _
  $region11: #{conv_bn_act_apply.1} parent=0 // pred_check_branch
    %13 = sbr.rel (0) target = $region13
  $region12: #{conv_bn_act_apply.1} parent=0 // pred_region
    _
  $region13: #{conv_bn_act_apply.1} parent=0 // pred_fallthru
    _
  %v15 = vld [vmem:[%s2] sm:$0x1]
  %v16 = vld [vmem:[%s0] sm:$0xf]
  %v17 = vld [vmem:[%s0 + $0x4] sm:$0xf]
  %v18 = vld [vmem:[%s0 + $0x8] sm:$0xf]
  %v19 = vld [vmem:[%s0 + $0xc] sm:$0xf]
  %v20 = vld [vmem:[%s0 + $0x10] sm:$0xf]
  %v21 = vld [vmem:[%s0 + $0x14] sm:$0xf]
  %v22 = vld [vmem:[%s1] sm:$0xf]
  %v23 = vld [vmem:[%s1 + $0x4] sm:$0xf]
  %v24 = vld [vmem:[%s1 + $0x8] sm:$0xf]
  %v25 = vld [vmem:[%s1 + $0xc] sm:$0xf]
  %v26 = vld [vmem:[%s1 + $0x10] sm:$0xf]
  %v27 = vld [vmem:[%s1 + $0x14] sm:$0xf]
  %v28 = vld [vmem:[%s1 + $0x18] sm:$0xf]
  %v29 = vld [vmem:[%s1 + $0x1c] sm:$0xf]
  %v30 = vld [vmem:[%s1 + $0x20] sm:$0xf]
  %v31 = vld [vmem:[%s1 + $0x24] sm:$0xf]
  %v32 = vld [vmem:[%s1 + $0x28] sm:$0xf]
  %v33 = vld [vmem:[%s1 + $0x2c] sm:$0xf]
  %v34 = vld [vmem:[%s1 + $0x30] sm:$0xf]
  %v35 = vld [vmem:[%s1 + $0x34] sm:$0xf]
  %v36 = vld [vmem:[%s1 + $0x38] sm:$0xf]
  %v37 = vld [vmem:[%s1 + $0x3c] sm:$0xf]
  %v44 = vunpack.c.l.b16 %v16
  %v45 = vunpack.c.l.b16 %v17
  %v46 = vunpack.c.l.b16 %v18
  %v47 = vunpack.c.l.b16 %v19
  %v48 = vunpack.c.l.b16 %v20
  %v49 = vunpack.c.l.b16 %v21
  %v50 = vpack.c.b16 %v45, %v44
  %v51 = vpack.c.b16 %v47, %v46
  %v52 = vpack.c.b16 %v49, %v48
  %v72 = vunpack.c.l.b16 %v22
  %v73 = vunpack.c.l.b16 %v23
  %v74 = vunpack.c.l.b16 %v24
  %v75 = vunpack.c.l.b16 %v25
  %v76 = vunpack.c.l.b16 %v26
  %v77 = vunpack.c.l.b16 %v27
  %v78 = vunpack.c.l.b16 %v28
  %v79 = vunpack.c.l.b16 %v29
  %v80 = vunpack.c.l.b16 %v30
  %v81 = vunpack.c.l.b16 %v31
  %v82 = vunpack.c.l.b16 %v32
  %v83 = vunpack.c.l.b16 %v33
  %v84 = vunpack.c.l.b16 %v34
  %v85 = vunpack.c.l.b16 %v35
  %v86 = vunpack.c.l.b16 %v36
  %v87 = vunpack.c.l.b16 %v37
  %v88 = vpack.c.b16 %v73, %v72
  %v89 = vpack.c.b16 %v75, %v74
  %v90 = vpack.c.b16 %v77, %v76
  %v91 = vpack.c.b16 %v79, %v78
  %v92 = vpack.c.b16 %v81, %v80
  %v93 = vpack.c.b16 %v83, %v82
  %v94 = vpack.c.b16 %v85, %v84
  %v95 = vpack.c.b16 %v87, %v86
  %104 = vmatprep.subr.bf16.mxu0 0
  %105 = vmatpush1.bf16.msra.mxu0 %v88
  %106 = vmatprep.subr.bf16.mxu0 0
  %107 = vmatpush1.bf16.msra.mxu0 %v89
  %108 = vmatprep.subr.bf16.mxu0 0
  %109 = vmatpush1.bf16.msra.mxu0 %v90
  %110 = vmatprep.subr.bf16.mxu0 0
  %111 = vmatpush1.bf16.msra.mxu0 %v91
  %112 = vmatprep.subr.bf16.mxu0 0
  %113 = vmatpush1.bf16.msra.mxu0 %v92
  %114 = vmatprep.subr.bf16.mxu0 0
  %115 = vmatpush1.bf16.msra.mxu0 %v93
  %116 = vmatprep.subr.bf16.mxu0 0
  %117 = vmatpush1.bf16.msra.mxu0 %v94
  %118 = vmatprep.subr.bf16.mxu0 0
  %119 = vmatpush1.bf16.msra.mxu0 %v95
  %120 = vmatprep.subr.bf16.mxu0 0
  %121 = vmatpush1.bf16.msra.mxu0 0
  %122 = vmatprep.subr.bf16.mxu0 0
  %123 = vmatpush1.bf16.msra.mxu0 0
  %124 = vmatprep.subr.bf16.mxu0 0
  %125 = vmatpush1.bf16.msra.mxu0 0
  %126 = vmatprep.subr.bf16.mxu0 0
  %127 = vmatpush1.bf16.msra.mxu0 0
  %128 = vmatprep.subr.bf16.mxu0 0
  %129 = vmatpush1.bf16.msra.mxu0 0
  %130 = vmatprep.subr.bf16.mxu0 0
  %131 = vmatpush1.bf16.msra.mxu0 0
  %132 = vmatprep.subr.bf16.mxu0 0
  %133 = vmatpush1.bf16.msra.mxu0 0
  %134 = vmatprep.subr.bf16.mxu0 0
  %135 = vmatpush1.bf16.msra.mxu0 0
  %136 = vmatprep.mubr.bf16.mxu0 0
  %137 = vmatmul.mubr.bf16.gmra.mrb[0].mxu0 %v50
  %v138 = vpop.f32.mrb[0].mxu0
  %v139 = vadd.f32 0.0, %v138
  %v140 = vpop.f32.mrb[0].mxu0
  %v141 = vpop.f32.mrb[0].mxu0
  %v142 = vadd.f32 0.0, %v141
  %v143 = vpop.f32.mrb[0].mxu0
  %144 = vmatprep.mubr.bf16.mxu0 0
  %145 = vmatmul.mubr.bf16.gmra.mrb[0].mxu0 %v51
  %v146 = vpop.f32.mrb[0].mxu0
  %v147 = vpop.f32.mrb[0].mxu0
  %v148 = vpop.f32.mrb[0].mxu0
  %v149 = vadd.f32 0.0, %v148
  %v150 = vpop.f32.mrb[0].mxu0
  %151 = vmatprep.mubr.bf16.mxu0 0
  %152 = vmatmul.mubr.bf16.gmra.mrb[0].mxu0 %v52
  %v153 = vpop.f32.mrb[0].mxu0
  %v154 = vadd.f32 0.0, %v153
  %v155 = vpop.f32.mrb[0].mxu0
  %v156 = vpop.f32.mrb[0].mxu0
  %v157 = vpop.f32.mrb[0].mxu0
  %158 = vdwg.mxu0
  %s159 = scalar_lea.vmem %s1, 64
  %v160 = vld [vmem:[%s159] sm:$0xf]
  %v161 = vld [vmem:[%s159 + $0x4] sm:$0xf]
  %v162 = vld [vmem:[%s159 + $0x8] sm:$0xf]
  %v163 = vld [vmem:[%s159 + $0xc] sm:$0xf]
  %v164 = vld [vmem:[%s159 + $0x10] sm:$0xf]
  %v165 = vld [vmem:[%s159 + $0x14] sm:$0xf]
  %v166 = vld [vmem:[%s159 + $0x18] sm:$0xf]
  %v167 = vld [vmem:[%s159 + $0x1c] sm:$0xf]
  %v168 = vld [vmem:[%s159 + $0x20] sm:$0xf]
  %v169 = vld [vmem:[%s159 + $0x24] sm:$0xf]
  %v170 = vld [vmem:[%s159 + $0x28] sm:$0xf]
  %v171 = vld [vmem:[%s159 + $0x2c] sm:$0xf]
  %v172 = vld [vmem:[%s159 + $0x30] sm:$0xf]
  %v173 = vld [vmem:[%s159 + $0x34] sm:$0xf]
  %v174 = vld [vmem:[%s159 + $0x38] sm:$0xf]
  %v175 = vld [vmem:[%s159 + $0x3c] sm:$0xf]
  %v192 = vunpack.c.l.b16 %v160
  %v193 = vunpack.c.l.b16 %v161
  %v194 = vunpack.c.l.b16 %v162
  %v195 = vunpack.c.l.b16 %v163
  %v196 = vunpack.c.l.b16 %v164
  %v197 = vunpack.c.l.b16 %v165
  %v198 = vunpack.c.l.b16 %v166
  %v199 = vunpack.c.l.b16 %v167
  %v200 = vunpack.c.l.b16 %v168
  %v201 = vunpack.c.l.b16 %v169
  %v202 = vunpack.c.l.b16 %v170
  %v203 = vunpack.c.l.b16 %v171
  %v204 = vunpack.c.l.b16 %v172
  %v205 = vunpack.c.l.b16 %v173
  %v206 = vunpack.c.l.b16 %v174
  %v207 = vunpack.c.l.b16 %v175
  %v208 = vpack.c.b16 %v193, %v192
  %v209 = vpack.c.b16 %v195, %v194
  %v210 = vpack.c.b16 %v197, %v196
  %v211 = vpack.c.b16 %v199, %v198
  %v212 = vpack.c.b16 %v201, %v200
  %v213 = vpack.c.b16 %v203, %v202
  %v214 = vpack.c.b16 %v205, %v204
  %v215 = vpack.c.b16 %v207, %v206
  %224 = vmatprep.subr.bf16.mxu0 0
  %225 = vmatpush1.bf16.msra.mxu0 %v208
  %226 = vmatprep.subr.bf16.mxu0 0
  %227 = vmatpush1.bf16.msra.mxu0 %v209
  %228 = vmatprep.subr.bf16.mxu0 0
  %229 = vmatpush1.bf16.msra.mxu0 %v210
  %230 = vmatprep.subr.bf16.mxu0 0
  %231 = vmatpush1.bf16.msra.mxu0 %v211
  %232 = vmatprep.subr.bf16.mxu0 0
  %233 = vmatpush1.bf16.msra.mxu0 %v212
  %234 = vmatprep.subr.bf16.mxu0 0
  %235 = vmatpush1.bf16.msra.mxu0 %v213
  %236 = vmatprep.subr.bf16.mxu0 0
  %237 = vmatpush1.bf16.msra.mxu0 %v214
  %238 = vmatprep.subr.bf16.mxu0 0
  %239 = vmatpush1.bf16.msra.mxu0 %v215
  %240 = vmatprep.subr.bf16.mxu0 0
  %241 = vmatpush1.bf16.msra.mxu0 0
  %242 = vmatprep.subr.bf16.mxu0 0
  %243 = vmatpush1.bf16.msra.mxu0 0
  %244 = vmatprep.subr.bf16.mxu0 0
  %245 = vmatpush1.bf16.msra.mxu0 0
  %246 = vmatprep.subr.bf16.mxu0 0
  %247 = vmatpush1.bf16.msra.mxu0 0
  %248 = vmatprep.subr.bf16.mxu0 0
  %249 = vmatpush1.bf16.msra.mxu0 0
  %250 = vmatprep.subr.bf16.mxu0 0
  %251 = vmatpush1.bf16.msra.mxu0 0
  %252 = vmatprep.subr.bf16.mxu0 0
  %253 = vmatpush1.bf16.msra.mxu0 0
  %254 = vmatprep.subr.bf16.mxu0 0
  %255 = vmatpush1.bf16.msra.mxu0 0
  %256 = vmatprep.mubr.bf16.mxu0 0
  %257 = vmatmul.mubr.bf16.gmra.mrb[0].mxu0 %v50
  %v258 = vpop.f32.mrb[0].mxu0
  %v259 = vadd.f32 0.0, %v258
  %v260 = vpop.f32.mrb[0].mxu0
  %v261 = vpop.f32.mrb[0].mxu0
  %v262 = vadd.f32 0.0, %v261
  %v263 = vpop.f32.mrb[0].mxu0
  %264 = vmatprep.mubr.bf16.mxu0 0
  %265 = vmatmul.mubr.bf16.gmra.mrb[0].mxu0 %v51
  %v266 = vpop.f32.mrb[0].mxu0
  %v267 = vadd.f32 0.0, %v266
  %v268 = vpop.f32.mrb[0].mxu0
  %v269 = vpop.f32.mrb[0].mxu0
  %v270 = vadd.f32 0.0, %v269
  %v271 = vpop.f32.mrb[0].mxu0
  %272 = vmatprep.mubr.bf16.mxu0 0
  %273 = vmatmul.mubr.bf16.gmra.mrb[0].mxu0 %v52
  %v274 = vpop.f32.mrb[0].mxu0
  %v275 = vadd.f32 0.0, %v274
  %v276 = vpop.f32.mrb[0].mxu0
  %v277 = vpop.f32.mrb[0].mxu0
  %v278 = vadd.f32 0.0, %v277
  %v279 = vpop.f32.mrb[0].mxu0
  %280 = vdwg.mxu0
  %s281 = scalar_lea.vmem %s1, 128
  %v282 = vld [vmem:[%s281] sm:$0xf]
  %v283 = vld [vmem:[%s281 + $0x4] sm:$0xf]
  %v284 = vld [vmem:[%s281 + $0x8] sm:$0xf]
  %v285 = vld [vmem:[%s281 + $0xc] sm:$0xf]
  %v286 = vld [vmem:[%s281 + $0x10] sm:$0xf]
  %v287 = vld [vmem:[%s281 + $0x14] sm:$0xf]
  %v288 = vld [vmem:[%s281 + $0x18] sm:$0xf]
  %v289 = vld [vmem:[%s281 + $0x1c] sm:$0xf]
  %v290 = vld [vmem:[%s281 + $0x20] sm:$0xf]
  %v291 = vld [vmem:[%s281 + $0x24] sm:$0xf]
  %v292 = vld [vmem:[%s281 + $0x28] sm:$0xf]
  %v293 = vld [vmem:[%s281 + $0x2c] sm:$0xf]
  %v294 = vld [vmem:[%s281 + $0x30] sm:$0xf]
  %v295 = vld [vmem:[%s281 + $0x34] sm:$0xf]
  %v296 = vld [vmem:[%s281 + $0x38] sm:$0xf]
  %v297 = vld [vmem:[%s281 + $0x3c] sm:$0xf]
  %v314 = vunpack.c.l.b16 %v282
  %v315 = vunpack.c.l.b16 %v283
  %v316 = vunpack.c.l.b16 %v284
  %v317 = vunpack.c.l.b16 %v285
  %v318 = vunpack.c.l.b16 %v286
  %v319 = vunpack.c.l.b16 %v287
  %v320 = vunpack.c.l.b16 %v288
  %v321 = vunpack.c.l.b16 %v289
  %v322 = vunpack.c.l.b16 %v290
  %v323 = vunpack.c.l.b16 %v291
  %v324 = vunpack.c.l.b16 %v292
  %v325 = vunpack.c.l.b16 %v293
  %v326 = vunpack.c.l.b16 %v294
  %v327 = vunpack.c.l.b16 %v295
  %v328 = vunpack.c.l.b16 %v296
  %v329 = vunpack.c.l.b16 %v297
  %v330 = vpack.c.b16 %v315, %v314
  %v331 = vpack.c.b16 %v317, %v316
  %v332 = vpack.c.b16 %v319, %v318
  %v333 = vpack.c.b16 %v321, %v320
  %v334 = vpack.c.b16 %v323, %v322
  %v335 = vpack.c.b16 %v325, %v324
  %v336 = vpack.c.b16 %v327, %v326
  %v337 = vpack.c.b16 %v329, %v328
  %346 = vmatprep.subr.bf16.mxu0 0
  %347 = vmatpush1.bf16.msra.mxu0 %v330
  %348 = vmatprep.subr.bf16.mxu0 0
  %349 = vmatpush1.bf16.msra.mxu0 %v331
  %350 = vmatprep.subr.bf16.mxu0 0
  %351 = vmatpush1.bf16.msra.mxu0 %v332
  %352 = vmatprep.subr.bf16.mxu0 0
  %353 = vmatpush1.bf16.msra.mxu0 %v333
  %354 = vmatprep.subr.bf16.mxu0 0
  %355 = vmatpush1.bf16.msra.mxu0 %v334
  %356 = vmatprep.subr.bf16.mxu0 0
  %357 = vmatpush1.bf16.msra.mxu0 %v335
  %358 = vmatprep.subr.bf16.mxu0 0
  %359 = vmatpush1.bf16.msra.mxu0 %v336
  %360 = vmatprep.subr.bf16.mxu0 0
  %361 = vmatpush1.bf16.msra.mxu0 %v337
  %362 = vmatprep.subr.bf16.mxu0 0
  %363 = vmatpush1.bf16.msra.mxu0 0
  %364 = vmatprep.subr.bf16.mxu0 0
  %365 = vmatpush1.bf16.msra.mxu0 0
  %366 = vmatprep.subr.bf16.mxu0 0
  %367 = vmatpush1.bf16.msra.mxu0 0
  %368 = vmatprep.subr.bf16.mxu0 0
  %369 = vmatpush1.bf16.msra.mxu0 0
  %370 = vmatprep.subr.bf16.mxu0 0
  %371 = vmatpush1.bf16.msra.mxu0 0
  %372 = vmatprep.subr.bf16.mxu0 0
  %373 = vmatpush1.bf16.msra.mxu0 0
  %374 = vmatprep.subr.bf16.mxu0 0
  %375 = vmatpush1.bf16.msra.mxu0 0
  %376 = vmatprep.subr.bf16.mxu0 0
  %377 = vmatpush1.bf16.msra.mxu0 0
  %378 = vmatprep.mubr.bf16.mxu0 0
  %379 = vmatmul.mubr.bf16.gmra.mrb[0].mxu0 %v50
  %v380 = vpop.f32.mrb[0].mxu0
  %v381 = vadd.f32 0.0, %v380
  %v382 = vpop.f32.mrb[0].mxu0
  %v383 = vpop.f32.mrb[0].mxu0
  %v384 = vadd.f32 0.0, %v383
  %v385 = vpop.f32.mrb[0].mxu0
  %386 = vmatprep.mubr.bf16.mxu0 0
  %387 = vmatmul.mubr.bf16.gmra.mrb[0].mxu0 %v51
  %v388 = vpop.f32.mrb[0].mxu0
  %v389 = vadd.f32 0.0, %v388
  %v390 = vpop.f32.mrb[0].mxu0
  %v391 = vpop.f32.mrb[0].mxu0
  %v392 = vadd.f32 0.0, %v391
  %v393 = vpop.f32.mrb[0].mxu0
  %394 = vmatprep.mubr.bf16.mxu0 0
  %395 = vmatmul.mubr.bf16.gmra.mrb[0].mxu0 %v52
  %v396 = vpop.f32.mrb[0].mxu0
  %v397 = vadd.f32 0.0, %v396
  %v398 = vpop.f32.mrb[0].mxu0
  %v399 = vpop.f32.mrb[0].mxu0
  %v400 = vadd.f32 0.0, %v399
  %v401 = vpop.f32.mrb[0].mxu0
  %402 = vdwg.mxu0
  %vm406 = vcmask 1046528
  %v407 = vrot.slane %v259, 1
  %v408 = vrot.slane %v262, 1
  %v409 = vsel %vm406, %v407, %v408
  %v410 = vrot.slane %v267, 1
  %v411 = vsel %vm406, %v408, %v410
  %v414 = vadd.f32 %v139, %v409
  %v415 = vadd.f32 %v142, %v411
  %vm419 = vcmask 1045504
  %v420 = vrot.slane %v381, 2
  %v421 = vrot.slane %v384, 2
  %v422 = vsel %vm419, %v420, %v421
  %v423 = vrot.slane %v389, 2
  %v424 = vsel %vm419, %v421, %v423
  %v427 = vadd.f32 %v414, %v422
  %v428 = vadd.f32 %v415, %v424
  %v430 = vlaneseq
  %v431 = vshrl.u32 %v430, 7
  %v432 = vsub.s32 0, %v431
  %v433 = vrot.slane %v15, %v432
  %v435 = vadd.f32 %v427, %v433
  %v436 = vadd.f32 %v428, %v433
  %v437 = vmax.f32 %v435, 0.0
  %v438 = vmax.f32 %v436, 0.0
  %439 = vst [vmem:[%s3] sm:$0xff] %v437
  %440 = vst [vmem:[%s3 + $0x8] sm:$0xff] %v438
  %v444 = vrot.slane %v270, 1
  %v445 = vrot.slane %v275, 1
  %v446 = vsel %vm406, %v444, %v445
  %v447 = vrot.slane %v278, 1
  %v448 = vsel %vm406, %v445, %v447
  %v451 = vadd.f32 %v149, %v446
  %v452 = vadd.f32 %v154, %v448
  %v456 = vrot.slane %v392, 2
  %v457 = vrot.slane %v397, 2
  %v458 = vsel %vm419, %v456, %v457
  %v459 = vrot.slane %v400, 2
  %v460 = vsel %vm419, %v457, %v459
  %v463 = vadd.f32 %v451, %v458
  %v464 = vadd.f32 %v452, %v460
  %v465 = vadd.f32 %v463, %v433
  %v466 = vadd.f32 %v464, %v433
  %v467 = vmax.f32 %v465, 0.0
  %v468 = vmax.f32 %v466, 0.0
  %s469 = scalar_lea.vmem %s3, 16
  %470 = vst [vmem:[%s469] sm:$0xff] %v467
  %471 = vst [vmem:[%s469 + $0x8] sm:$0xff] %v468
  // Predicated region
  $region14: #{conv_bn_act_apply.1} parent=0 // pred_check
    _
  $region15: #{conv_bn_act_apply.1} parent=0 // pred_check_branch
    %473 = sbr.rel (0) target = $region17
  $region16: #{conv_bn_act_apply.1} parent=0 // pred_region
    _
  $region17: #{conv_bn_act_apply.1} parent=0 // pred_fallthru
    _
  // Predicated region
  $region18: #{conv_bn_act_apply.1} parent=0 // pred_check
    _
  $region19: #{conv_bn_act_apply.1} parent=0 // pred_check_branch
    %475 = sbr.rel (0) target = $region21
  $region20: #{conv_bn_act_apply.1} parent=0 // pred_region
    _
  $region21: #{conv_bn_act_apply.1} parent=0 // pred_fallthru
    _

</llo_original>
